<compile_context>
chip_gen: v5e
topology: v5e:2x2
jax: 0.10.0
libtpu: 0.0.40
codegen_flags: <defaults>
</compile_context>

<pallas_src>
import jax
import jax.numpy as jnp
import numpy as np
from jax.experimental import pallas as pl
from jax.experimental.pallas import tpu as pltpu


def _round_up(v, m):
    return (v + m - 1) // m * m


# ---------------------------------------------------------------------------
# Phase 1: per-node work.
#   h     = x @ W.T + b
#   f_col = exp(clip(e, 0, 10))          (n, 1)   -> dst-side factor
#   f_row = exp(clip(e, 0, 10))          (1, n)   -> src-side factor, emitted
#           lane-dense directly from the row-layout energy input (no relayout
#           between phases).
# ---------------------------------------------------------------------------
def node_kernel(x_ref, wt_ref, b_ref, ec_ref, er_ref, h_ref, fc_ref, fr_ref):
    h = jnp.dot(x_ref[...], wt_ref[...], preferred_element_type=jnp.float32)
    h_ref[...] = (h + b_ref[...]).astype(h_ref.dtype)
    fc_ref[...] = jnp.exp(jnp.clip(ec_ref[...], 0.0, 10.0))
    fr_ref[...] = jnp.exp(jnp.clip(er_ref[...], 0.0, 10.0))


# ---------------------------------------------------------------------------
# Phase 2: edge scaling + weighted-sum aggregation.
#   grid = (dst tiles, src tiles); src is the reduction axis, the output block
#   is resident across it and accumulated in an f32 VMEM scratch.
#   When `resident_h` the whole h matrix lives in VMEM (constant index_map)
#   and the per-src-tile slice is taken in-kernel with pl.ds.
# ---------------------------------------------------------------------------
def _make_aggregate_kernel(tile_n, resident_h):
    def aggregate_kernel(adj_ref, h_ref, fd_ref, fs_ref, out_ref, acc_ref):
        j = pl.program_id(1)

        @pl.when(j == 0)
        def _():
            acc_ref[...] = jnp.zeros_like(acc_ref)

        # scale[d, s] = 1 / (1 + exp(e_d) * exp(e_s)); per-node exps
        # precomputed in phase 1, the remaining N^2 reciprocal rides the
        # otherwise-idle EUP slot.
        scale = pl.reciprocal(1.0 + fd_ref[...] * fs_ref[...], approx=True)
        w_new = adj_ref[...].astype(jnp.float32) * scale      # (Tdst, Tsrc)

        if resident_h:
            src0 = pl.multiple_of(j * tile_n, tile_n)
            h_blk = h_ref[pl.ds(src0, tile_n), :]
        else:
            h_blk = h_ref[...]

        acc_ref[...] += jnp.dot(w_new.astype(h_blk.dtype), h_blk,
                                preferred_element_type=jnp.float32)

        @pl.when(j == pl.num_programs(1) - 1)
        def _():
            out_ref[...] = acc_ref[...].astype(out_ref.dtype)

    return aggregate_kernel


def gpr_conv(x, adj, energy, weight, bias, *, tile_n=256,
             matmul_dtype=jnp.bfloat16):
    """GPRConv_dgl forward.

    x:      (N, Din)   node features
    adj:    (N, N)     adj[dst, src] = edge weight w (0 where no edge)
    energy: (N, 1)     per-node energy
    weight: (Dout, Din) nn.Linear weight (PyTorch layout)
    bias:   (Dout,)
    matmul_dtype: storage dtype for adj / h.  bf16 (default) halves HBM
        traffic and uses the native MXU rate; expect ~1e-2 tolerance vs the
        f32 reference.  Pass jnp.float32 for tight (~5e-3) parity.
    """
    n, d_in = x.shape
    d_out = weight.shape[0]

    # Keep at least 2 dst tiles where possible so the "parallel" dst axis can
    # shard across both TensorCores on v7x (single-TC chips are unaffected).
    tile_n = max(128, tile_n)
    while tile_n > 128 and _round_up(n, tile_n) // tile_n < 2:
        tile_n //= 2

    n_pad = _round_up(n, tile_n)
    d_out_pad = _round_up(d_out, 128)      # lane-dense output blocks
    n_tiles = n_pad // tile_n

    f32 = jnp.float32
    itemsize = jnp.dtype(matmul_dtype).itemsize

    # ---- wrapper-side padding / layout plumbing (plain XLA, cheap) ---------
    x_p = jnp.zeros((n_pad, d_in), f32).at[:n].set(x.astype(f32))
    adj_p = jnp.zeros((n_pad, n_pad), matmul_dtype).at[:n, :n].set(
        adj.astype(matmul_dtype))
    e_col = jnp.zeros((n_pad, 1), f32).at[:n].set(energy.astype(f32))
    e_row = e_col.reshape(1, n_pad)        # lane-dense src-side energy
    wt_p = jnp.zeros((d_in, d_out_pad), f32).at[:, :d_out].set(
        weight.T.astype(f32))
    b_p = jnp.zeros((1, d_out_pad), f32).at[0, :d_out].set(bias.astype(f32))

    # ---- per-generation VMEM cap (v7x: 64 MiB physical) --------------------
    try:
        phys_vmem = int(pltpu.get_tpu_info().vmem_capacity_bytes)
    except Exception:
        phys_vmem = 64 * 1024 * 1024       # conservative fallback
    vmem_cap = int(phys_vmem * 0.8)

    # ---------------- phase 1: per-node linear + exp ------------------------
    # Din/Dout are small and W.T / bias are resident, so use fat row tiles.
    tile1 = tile_n * max(1, min(n_tiles, max(1, 512 // tile_n)))
    n_tiles1 = n_pad // tile1

    h, f_col, f_row = pl.pallas_call(
        node_kernel,
        out_shape=(jax.ShapeDtypeStruct((n_pad, d_out_pad), matmul_dtype),
                   jax.ShapeDtypeStruct((n_pad, 1), f32),
                   jax.ShapeDtypeStruct((1, n_pad), f32)),
        grid=(n_tiles1,),
        in_specs=[
            pl.BlockSpec((tile1, d_in), lambda i: (i, 0)),          # x
            pl.BlockSpec((d_in, d_out_pad), lambda i: (0, 0)),      # W.T
            pl.BlockSpec((1, d_out_pad), lambda i: (0, 0)),         # bias
            pl.BlockSpec((tile1, 1), lambda i: (i, 0)),             # e (col)
            pl.BlockSpec((1, tile1), lambda i: (0, i)),             # e (row)
        ],
        out_specs=(
            pl.BlockSpec((tile1, d_out_pad), lambda i: (i, 0)),     # h
            pl.BlockSpec((tile1, 1), lambda i: (i, 0)),             # f_col
            pl.BlockSpec((1, tile1), lambda i: (0, i)),             # f_row
        ),
        compiler_params=pltpu.CompilerParams(
            dimension_semantics=("parallel",)),
    )(x_p, wt_p, b_p, e_col, e_row)

    # ---------------- phase 2: tiled aggregation ----------------------------
    # Make h fully VMEM-resident (streamed from HBM exactly once) when it fits
    # a conservative budget; otherwise fall back to per-src-tile streaming.
    h_resident_bytes = 2 * n_pad * d_out_pad * itemsize     # double-buffered
    resident_h = h_resident_bytes <= min(24 * 1024 * 1024, vmem_cap // 2)

    est_vmem = (2 * tile_n * tile_n * itemsize               # adj (x2 bufs)
                + (h_resident_bytes if resident_h
                   else 2 * tile_n * d_out_pad * itemsize)   # h
                + 4 * tile_n * 128 * 4                       # f_dst/f_src strips
                + 2 * tile_n * d_out_pad * 4                 # out tile (x2 bufs)
                + tile_n * d_out_pad * 4                     # acc scratch
                + 4 * tile_n * tile_n * 4)                   # in-kernel f32 temps
    vmem_limit = int(min(max(2 * est_vmem, 16 * 1024 * 1024), vmem_cap))

    h_hbm_bytes = (n_pad * d_out_pad * itemsize if resident_h
                   else n_tiles * n_pad * d_out_pad * itemsize)
    cost = pl.CostEstimate(
        flops=2 * n_pad * n_pad * d_out_pad + 3 * n_pad * n_pad,
        transcendentals=n_pad * n_pad,
        bytes_accessed=(n_pad * n_pad * itemsize
                        + h_hbm_bytes
                        + n_pad * d_out_pad * 4),
    )

    if resident_h:
        h_spec = pl.BlockSpec((n_pad, d_out_pad), lambda i, j: (0, 0))
    else:
        h_spec = pl.BlockSpec((tile_n, d_out_pad), lambda i, j: (j, 0))

    out_p = pl.pallas_call(
        _make_aggregate_kernel(tile_n, resident_h),
        out_shape=jax.ShapeDtypeStruct((n_pad, d_out_pad), f32),
        grid=(n_tiles, n_tiles),                      # (dst, src=reduction)
        in_specs=[
            pl.BlockSpec((tile_n, tile_n), lambda i, j: (i, j)),     # adj
            h_spec,                                                  # h[src]
            pl.BlockSpec((tile_n, 1), lambda i, j: (i, 0)),          # f_dst
            pl.BlockSpec((1, tile_n), lambda i, j: (0, j)),          # f_src
        ],
        out_specs=pl.BlockSpec((tile_n, d_out_pad), lambda i, j: (i, 0)),
        scratch_shapes=[pltpu.VMEM((tile_n, d_out_pad), jnp.float32)],
        compiler_params=pltpu.CompilerParams(
            dimension_semantics=("parallel", "arbitrary"),
            vmem_limit_bytes=vmem_limit),
        cost_estimate=cost,
    )(adj_p, h, f_col, f_row)

    return out_p[:n, :d_out]


def gpr_conv_ref(x, adj, energy, weight, bias):
    e = jnp.clip(energy, 0.0, 10.0)
    h = x @ weight.T + bias
    scale = 1.0 / (1.0 + jnp.exp(e + e.T))
    return (adj * scale) @ h


if __name__ == "__main__":
    # Non-multiple-of-tile shapes exercise the padding path and the >=2 dst
    # tiles constraint (tile auto-drops 256 -> 128, N_pad=256 -> 2x2 grid).
    N, D_IN, D_OUT = 200, 48, 32

    key = jax.random.PRNGKey(0)
    k_x, k_e, k_adj, k_mask, k_w, k_b = jax.random.split(key, 6)

    x = jax.random.normal(k_x, (N, D_IN), dtype=jnp.float32)
    energy = jax.random.normal(k_e, (N, 1), dtype=jnp.float32) * 3.0  # some outside [0,10]

    # Sparse-ish random graph encoded densely: adj[dst, src] = edge weight.
    edge_w = jax.random.uniform(k_adj, (N, N), dtype=jnp.float32)
    mask = (jax.random.uniform(k_mask, (N, N)) < 0.3).astype(jnp.float32)
    adj = edge_w * mask

    # Deterministic nn.Linear(input_size, output_size) parameters.
    bound = 1.0 / np.sqrt(D_IN)
    weight = jax.random.uniform(k_w, (D_OUT, D_IN), minval=-bound, maxval=bound,
                                dtype=jnp.float32)
    bias = jax.random.uniform(k_b, (D_OUT,), minval=-bound, maxval=bound,
                              dtype=jnp.float32)

    ref = gpr_conv_ref(x, adj, energy, weight, bias)

    # f32 storage path: tight tolerance (only the approx EUP reciprocal differs).
    out_f32 = jax.block_until_ready(
        gpr_conv(x, adj, energy, weight, bias, matmul_dtype=jnp.float32))
    np.testing.assert_allclose(np.asarray(out_f32), np.asarray(ref),
                               rtol=5e-3, atol=5e-3)

    # Default bf16 storage path (perf default): looser tolerance.
    out_bf16 = jax.block_until_ready(gpr_conv(x, adj, energy, weight, bias))
    np.testing.assert_allclose(np.asarray(out_bf16), np.asarray(ref),
                               rtol=3e-2, atol=3e-2)

    print("KERNEL_OK")
</pallas_src>

<mosaic_0001>
module attributes {stable_mosaic.version = 11 : i64} {
  func.func @node_kernel(%arg0: i32, %arg1: memref<256x48xf32, #tpu.memory_space<vmem>>, %arg2: memref<48x128xf32, #tpu.memory_space<vmem>>, %arg3: memref<1x128xf32, #tpu.memory_space<vmem>>, %arg4: memref<256x1xf32, #tpu.memory_space<vmem>>, %arg5: memref<1x256xf32, #tpu.memory_space<vmem>>, %arg6: memref<256x128xf32, #tpu.memory_space<vmem>>, %arg7: memref<256x1xf32, #tpu.memory_space<vmem>>, %arg8: memref<1x256xf32, #tpu.memory_space<vmem>>) attributes {dimension_semantics = [#tpu.dimension_semantics<parallel>], iteration_bounds = array<i64: 1>, scalar_prefetch = 0 : i64, scratch_operands = 0 : i64, tpu.core_type = #tpu.core_type<tc>, window_params = [{transform_indices = @transform_0, window_bounds = array<i64: 256, 48>}, {pipeline_mode = #tpu.pipeline_mode<synchronous>, transform_indices = @transform_1, window_bounds = array<i64: 48, 128>}, {pipeline_mode = #tpu.pipeline_mode<synchronous>, transform_indices = @transform_2, window_bounds = array<i64: 1, 128>}, {transform_indices = @transform_3, window_bounds = array<i64: 256, 1>}, {transform_indices = @transform_4, window_bounds = array<i64: 1, 256>}, {transform_indices = @transform_5, window_bounds = array<i64: 256, 128>}, {transform_indices = @transform_6, window_bounds = array<i64: 256, 1>}, {transform_indices = @transform_7, window_bounds = array<i64: 1, 256>}]} {
    %c0 = arith.constant 0 : index
    %c0_0 = arith.constant 0 : index
    %0 = vector.load %arg1[%c0, %c0_0] : memref<256x48xf32, #tpu.memory_space<vmem>>, vector<256x48xf32>
    %c0_1 = arith.constant 0 : index
    %c0_2 = arith.constant 0 : index
    %1 = vector.load %arg2[%c0_1, %c0_2] : memref<48x128xf32, #tpu.memory_space<vmem>>, vector<48x128xf32>
    %cst = arith.constant dense<0.000000e+00> : vector<256x128xf32>
    %2 = tpu.matmul %0, %1, %cst {dimension_numbers = #tpu.dot_dimension_numbers<[1], [0], [0], [1], [0, 0, 1, 1], [], []>} : vector<256x48xf32>, vector<48x128xf32>, vector<256x128xf32> -> vector<256x128xf32>
    %c0_3 = arith.constant 0 : index
    %c0_4 = arith.constant 0 : index
    %3 = vector.load %arg3[%c0_3, %c0_4] : memref<1x128xf32, #tpu.memory_space<vmem>>, vector<1x128xf32>
    %4 = vector.broadcast %3 : vector<1x128xf32> to vector<256x128xf32>
    %5 = arith.addf %2, %4 : vector<256x128xf32>
    %c0_5 = arith.constant 0 : index
    %c0_6 = arith.constant 0 : index
    %6 = vector.load %arg6[%c0_5, %c0_6] : memref<256x128xf32, #tpu.memory_space<vmem>>, vector<256x128xf32>
    tpu.vector_store %arg6[%c0_5, %c0_6], %5 {strides = array<i32>} : memref<256x128xf32, #tpu.memory_space<vmem>>, vector<256x128xf32>,
    %c0_7 = arith.constant 0 : index
    %c0_8 = arith.constant 0 : index
    %7 = vector.load %arg4[%c0_7, %c0_8] : memref<256x1xf32, #tpu.memory_space<vmem>>, vector<256x1xf32>
    %cst_9 = arith.constant 0.000000e+00 : f32
    %cst_10 = arith.constant 1.000000e+01 : f32
    %8 = vector.broadcast %cst_9 : f32 to vector<256x1xf32>
    %9 = arith.maximumf %8, %7 : vector<256x1xf32>
    %10 = vector.broadcast %cst_10 : f32 to vector<256x1xf32>
    %11 = arith.minimumf %10, %9 : vector<256x1xf32>
    %12 = math.exp %11 : vector<256x1xf32>
    %c0_11 = arith.constant 0 : index
    %c0_12 = arith.constant 0 : index
    %13 = vector.load %arg7[%c0_11, %c0_12] : memref<256x1xf32, #tpu.memory_space<vmem>>, vector<256x1xf32>
    tpu.vector_store %arg7[%c0_11, %c0_12], %12 {strides = array<i32>} : memref<256x1xf32, #tpu.memory_space<vmem>>, vector<256x1xf32>,
    %c0_13 = arith.constant 0 : index
    %c0_14 = arith.constant 0 : index
    %14 = vector.load %arg5[%c0_13, %c0_14] : memref<1x256xf32, #tpu.memory_space<vmem>>, vector<1x256xf32>
    %cst_15 = arith.constant 0.000000e+00 : f32
    %cst_16 = arith.constant 1.000000e+01 : f32
    %15 = vector.broadcast %cst_15 : f32 to vector<1x256xf32>
    %16 = arith.maximumf %15, %14 : vector<1x256xf32>
    %17 = vector.broadcast %cst_16 : f32 to vector<1x256xf32>
    %18 = arith.minimumf %17, %16 : vector<1x256xf32>
    %19 = math.exp %18 : vector<1x256xf32>
    %c0_17 = arith.constant 0 : index
    %c0_18 = arith.constant 0 : index
    %20 = vector.load %arg8[%c0_17, %c0_18] : memref<1x256xf32, #tpu.memory_space<vmem>>, vector<1x256xf32>
    tpu.vector_store %arg8[%c0_17, %c0_18], %19 {strides = array<i32>} : memref<1x256xf32, #tpu.memory_space<vmem>>, vector<1x256xf32>,
    return
  }
  func.func @transform_0(%arg0: i32) -> (i32, i32) {
    %c0_i32 = arith.constant 0 : i32
    %c0_i32_0 = arith.constant 0 : i32
    return %arg0, %c0_i32 : i32, i32
  }
  func.func @transform_1(%arg0: i32) -> (i32, i32) {
    %c0_i32 = arith.constant 0 : i32
    %c0_i32_0 = arith.constant 0 : i32
    %c0_i32_1 = arith.constant 0 : i32
    return %c0_i32, %c0_i32_0 : i32, i32
  }
  func.func @transform_2(%arg0: i32) -> (i32, i32) {
    %c0_i32 = arith.constant 0 : i32
    %c0_i32_0 = arith.constant 0 : i32
    %c0_i32_1 = arith.constant 0 : i32
    return %c0_i32, %c0_i32_0 : i32, i32
  }
  func.func @transform_3(%arg0: i32) -> (i32, i32) {
    %c0_i32 = arith.constant 0 : i32
    %c0_i32_0 = arith.constant 0 : i32
    return %arg0, %c0_i32 : i32, i32
  }
  func.func @transform_4(%arg0: i32) -> (i32, i32) {
    %c0_i32 = arith.constant 0 : i32
    %c0_i32_0 = arith.constant 0 : i32
    return %c0_i32, %arg0 : i32, i32
  }
  func.func @transform_5(%arg0: i32) -> (i32, i32) {
    %c0_i32 = arith.constant 0 : i32
    %c0_i32_0 = arith.constant 0 : i32
    return %arg0, %c0_i32 : i32, i32
  }
  func.func @transform_6(%arg0: i32) -> (i32, i32) {
    %c0_i32 = arith.constant 0 : i32
    %c0_i32_0 = arith.constant 0 : i32
    return %arg0, %c0_i32 : i32, i32
  }
  func.func @transform_7(%arg0: i32) -> (i32, i32) {
    %c0_i32 = arith.constant 0 : i32
    %c0_i32_0 = arith.constant 0 : i32
    return %c0_i32, %arg0 : i32, i32
  }
}

</mosaic_0001>

<llo_original>
// kernel: tpu_custom_call.1
$region0: #{tpu_custom_call.1}
  #allocation0 [shape = 'u32[]', space=smem, size = 0x4, offset = 0x4, fixed_abs, tag = 'smem constant byte address 0x4 - core index']
  #allocation1 [shape = 'u32[72,128]{1,0:T(1,128)}', space=vmem, size = 0x9000, scoped, tag = 'internal scratch']
  %s0 = inlined_call_operand.vmem [shape: f32[256,48], index: 0, kind: input, shape index: {}]
  %s1 = inlined_call_operand.vmem [shape: f32[48,128], index: 1, kind: input, shape index: {}]
  %s2 = inlined_call_operand.vmem [shape: f32[1,128], index: 2, kind: input, shape index: {}]
  %s3 = inlined_call_operand.vmem [shape: f32[256,1], index: 3, kind: input, shape index: {}]
  %s4 = inlined_call_operand.vmem [shape: f32[1,256], index: 4, kind: input, shape index: {}]
  %s5 = inlined_call_operand.hbm [shape: f32[256,128], index: 5, kind: output, shape index: {0}]
  %s6 = inlined_call_operand.vmem [shape: f32[256,1], index: 6, kind: output, shape index: {1}]
  %s7 = inlined_call_operand.hbm [shape: f32[1,256], index: 7, kind: output, shape index: {2}]
  %8 = xla_tuple %s5, %s6, %s7
  %s9 = sld [smem:[#allocation0]]
  $region46: #{tpu_custom_call.1} parent=0
    _
  %s11 = ssub.s32 1, %s9
  %s12 = scalar_select 0, %s11, %s9
  $region1: #{tpu_custom_call.1} parent=0
    #allocation2 [shape = 'u8[131072]{0}', space=vmem, size = 0x20000, scoped, tag = 'output window, operand 0, single buffered']
    #allocation3 [shape = 's32[1]{0}', space=sflag, size = 0x4, scoped, tag = 'scoped memory for tpu_custom_call.1']
    #allocation4 [shape = 'u8[1024]{0}', space=vmem, size = 0x400, scoped, tag = 'output window, operand 2, single buffered']
    #allocation5 [shape = 's32[1]{0}', space=sflag, size = 0x4, scoped, tag = 'scoped memory for tpu_custom_call.1']
    %13 = vsyncpa [#allocation3], 0
    %14 = vsyncpa [#allocation5], 0
    // Predicated region
    $region2: #{tpu_custom_call.1} parent=1 // pred_check
      _
    $region3: #{tpu_custom_call.1} parent=1 // pred_check_branch
      %16 = sbr.rel (0) target = $region5
    $region4: #{tpu_custom_call.1} parent=1 // pred_region
      _
    $region5: #{tpu_custom_call.1} parent=1 // pred_fallthru
      _
    // Predicated region
    $region6: #{tpu_custom_call.1} parent=1 // pred_check
      _
    $region7: #{tpu_custom_call.1} parent=1 // pred_check_branch
      %18 = sbr.rel (0) target = $region9
    $region8: #{tpu_custom_call.1} parent=1 // pred_region
      _
    $region9: #{tpu_custom_call.1} parent=1 // pred_fallthru
      _
    // Predicated region
    $region10: #{tpu_custom_call.1} parent=1 // pred_check
      _
    $region11: #{tpu_custom_call.1} parent=1 // pred_check_branch
      %20 = sbr.rel (0) target = $region13
    $region12: #{tpu_custom_call.1} parent=1 // pred_region
      _
    $region13: #{tpu_custom_call.1} parent=1 // pred_fallthru
      _
    // Predicated region
    $region14: #{tpu_custom_call.1} parent=1 // pred_check
      _
    $region15: #{tpu_custom_call.1} parent=1 // pred_check_branch
      %22 = sbr.rel (0) target = $region17
    $region16: #{tpu_custom_call.1} parent=1 // pred_region
      _
    $region17: #{tpu_custom_call.1} parent=1 // pred_fallthru
      _
    // Predicated region
    $region18: #{tpu_custom_call.1} parent=1 // pred_check
      _
    $region19: #{tpu_custom_call.1} parent=1 // pred_check_branch
      %24 = sbr.rel (0) target = $region21
    $region20: #{tpu_custom_call.1} parent=1 // pred_region
      _
    $region21: #{tpu_custom_call.1} parent=1 // pred_fallthru
      _
    %v25 = vld [vmem:[%s0] sm:$0xff]
    %v26 = vld [vmem:[%s0 + $0x8] sm:$0xff]
    %v27 = vld [vmem:[%s0 + $0x10] sm:$0xff]
    %v28 = vld [vmem:[%s0 + $0x18] sm:$0xff]
    %v29 = vld [vmem:[%s0 + $0x20] sm:$0xff]
    %v30 = vld [vmem:[%s0 + $0x28] sm:$0xff]
    %v31 = vld [vmem:[%s0 + $0x30] sm:$0xff]
    %v32 = vld [vmem:[%s0 + $0x38] sm:$0xff]
    %v33 = vld [vmem:[%s0 + $0x40] sm:$0xff]
    %v34 = vld [vmem:[%s0 + $0x48] sm:$0xff]
    %v35 = vld [vmem:[%s0 + $0x50] sm:$0xff]
    %v36 = vld [vmem:[%s0 + $0x58] sm:$0xff]
    %v37 = vld [vmem:[%s0 + $0x60] sm:$0xff]
    %v38 = vld [vmem:[%s0 + $0x68] sm:$0xff]
    %v39 = vld [vmem:[%s0 + $0x70] sm:$0xff]
    %v40 = vld [vmem:[%s0 + $0x78] sm:$0xff]
    %v41 = vld [vmem:[%s0 + $0x80] sm:$0xff]
    %v42 = vld [vmem:[%s0 + $0x88] sm:$0xff]
    %v43 = vld [vmem:[%s0 + $0x90] sm:$0xff]
    %v44 = vld [vmem:[%s0 + $0x98] sm:$0xff]
    %v45 = vld [vmem:[%s0 + $0xa0] sm:$0xff]
    %v46 = vld [vmem:[%s0 + $0xa8] sm:$0xff]
    %v47 = vld [vmem:[%s0 + $0xb0] sm:$0xff]
    %v48 = vld [vmem:[%s0 + $0xb8] sm:$0xff]
    %v49 = vld [vmem:[%s0 + $0xc0] sm:$0xff]
    %v50 = vld [vmem:[%s0 + $0xc8] sm:$0xff]
    %v51 = vld [vmem:[%s0 + $0xd0] sm:$0xff]
    %v52 = vld [vmem:[%s0 + $0xd8] sm:$0xff]
    %v53 = vld [vmem:[%s0 + $0xe0] sm:$0xff]
    %v54 = vld [vmem:[%s0 + $0xe8] sm:$0xff]
    %v55 = vld [vmem:[%s0 + $0xf0] sm:$0xff]
    %v56 = vld [vmem:[%s0 + $0xf8] sm:$0xff]
    %v57 = vld [vmem:[%s1] sm:$0xff]
    %v58 = vld [vmem:[%s1 + $0x8] sm:$0xff]
    %v59 = vld [vmem:[%s1 + $0x10] sm:$0xff]
    %v60 = vld [vmem:[%s1 + $0x18] sm:$0xff]
    %v61 = vld [vmem:[%s1 + $0x20] sm:$0xff]
    %v62 = vld [vmem:[%s1 + $0x28] sm:$0xff]
    %v63 = vld [vmem:[%s2] sm:$0x1]
    %v65 = vperm.slane %v63, 0
    %vm67 = vcmask 392192
    %v69 = vsel %vm67, %v25, 0
    %v72 = vsel %vm67, %v26, 0
    %v75 = vsel %vm67, %v27, 0
    %v78 = vsel %vm67, %v28, 0
    %v81 = vsel %vm67, %v29, 0
    %v84 = vsel %vm67, %v30, 0
    %v87 = vsel %vm67, %v31, 0
    %v90 = vsel %vm67, %v32, 0
    %v93 = vsel %vm67, %v33, 0
    %v96 = vsel %vm67, %v34, 0
    %v99 = vsel %vm67, %v35, 0
    %v102 = vsel %vm67, %v36, 0
    %v105 = vsel %vm67, %v37, 0
    %v108 = vsel %vm67, %v38, 0
    %v111 = vsel %vm67, %v39, 0
    %v114 = vsel %vm67, %v40, 0
    %v117 = vsel %vm67, %v41, 0
    %v120 = vsel %vm67, %v42, 0
    %v123 = vsel %vm67, %v43, 0
    %v126 = vsel %vm67, %v44, 0
    %v129 = vsel %vm67, %v45, 0
    %v132 = vsel %vm67, %v46, 0
    %v135 = vsel %vm67, %v47, 0
    %v138 = vsel %vm67, %v48, 0
    %v141 = vsel %vm67, %v49, 0
    %v144 = vsel %vm67, %v50, 0
    %v147 = vsel %vm67, %v51, 0
    %v150 = vsel %vm67, %v52, 0
    %v153 = vsel %vm67, %v53, 0
    %v156 = vsel %vm67, %v54, 0
    %v159 = vsel %vm67, %v55, 0
    %v162 = vsel %vm67, %v56, 0
    %164 = vmatpush.msra.mxu0 0.0
    %165 = vmatpush.msra.mxu0 0.0
    %166 = vmatpush.msra.mxu0 0.0
    %167 = vmatpush.msra.mxu0 0.0
    %168 = vmatpush.msra.mxu0 0.0
    %169 = vmatpush.msra.mxu0 0.0
    %170 = vmatpush.msra.mxu0 0.0
    %171 = vmatpush.msra.mxu0 0.0
    %172 = vmatpush.msra.mxu0 0.0
    %173 = vmatpush.msra.mxu0 0.0
    %174 = vmatpush.msra.mxu0 %v62
    %175 = vmatpush.msra.mxu0 %v61
    %176 = vmatpush.msra.mxu0 %v60
    %177 = vmatpush.msra.mxu0 %v59
    %178 = vmatpush.msra.mxu0 %v58
    %179 = vmatpush.msra.mxu0 %v57
    %180 = vmatmul.f32.gmra.mxu0 %v69
    %v181 = vpop.f32.mrf.mxu0
    %v182 = vadd.f32 %v65, %v181
    %183 = vmatmul.f32.gmra.mxu0 %v72
    %v184 = vpop.f32.mrf.mxu0
    %v185 = vadd.f32 %v65, %v184
    %186 = vmatmul.f32.gmra.mxu0 %v75
    %v187 = vpop.f32.mrf.mxu0
    %v188 = vadd.f32 %v65, %v187
    %189 = vmatmul.f32.gmra.mxu0 %v78
    %v190 = vpop.f32.mrf.mxu0
    %v191 = vadd.f32 %v65, %v190
    %192 = vmatmul.f32.gmra.mxu0 %v81
    %v193 = vpop.f32.mrf.mxu0
    %v194 = vadd.f32 %v65, %v193
    %195 = vmatmul.f32.gmra.mxu0 %v84
    %v196 = vpop.f32.mrf.mxu0
    %v197 = vadd.f32 %v65, %v196
    %198 = vmatmul.f32.gmra.mxu0 %v87
    %v199 = vpop.f32.mrf.mxu0
    %v200 = vadd.f32 %v65, %v199
    %201 = vmatmul.f32.gmra.mxu0 %v90
    %v202 = vpop.f32.mrf.mxu0
    %v203 = vadd.f32 %v65, %v202
    %204 = vmatmul.f32.gmra.mxu0 %v93
    %v205 = vpop.f32.mrf.mxu0
    %v206 = vadd.f32 %v65, %v205
    %207 = vmatmul.f32.gmra.mxu0 %v96
    %v208 = vpop.f32.mrf.mxu0
    %v209 = vadd.f32 %v65, %v208
    %210 = vmatmul.f32.gmra.mxu0 %v99
    %v211 = vpop.f32.mrf.mxu0
    %v212 = vadd.f32 %v65, %v211
    %213 = vmatmul.f32.gmra.mxu0 %v102
    %v214 = vpop.f32.mrf.mxu0
    %v215 = vadd.f32 %v65, %v214
    %216 = vmatmul.f32.gmra.mxu0 %v105
    %v217 = vpop.f32.mrf.mxu0
    %v218 = vadd.f32 %v65, %v217
    %219 = vmatmul.f32.gmra.mxu0 %v108
    %v220 = vpop.f32.mrf.mxu0
    %v221 = vadd.f32 %v65, %v220
    %222 = vmatmul.f32.gmra.mxu0 %v111
    %v223 = vpop.f32.mrf.mxu0
    %v224 = vadd.f32 %v65, %v223
    %225 = vmatmul.f32.gmra.mxu0 %v114
    %v226 = vpop.f32.mrf.mxu0
    %v227 = vadd.f32 %v65, %v226
    %228 = vmatmul.f32.gmra.mxu0 %v117
    %v229 = vpop.f32.mrf.mxu0
    %v230 = vadd.f32 %v65, %v229
    %231 = vmatmul.f32.gmra.mxu0 %v120
    %v232 = vpop.f32.mrf.mxu0
    %v233 = vadd.f32 %v65, %v232
    %234 = vmatmul.f32.gmra.mxu0 %v123
    %v235 = vpop.f32.mrf.mxu0
    %v236 = vadd.f32 %v65, %v235
    %237 = vmatmul.f32.gmra.mxu0 %v126
    %v238 = vpop.f32.mrf.mxu0
    %v239 = vadd.f32 %v65, %v238
    %240 = vmatmul.f32.gmra.mxu0 %v129
    %v241 = vpop.f32.mrf.mxu0
    %v242 = vadd.f32 %v65, %v241
    %243 = vmatmul.f32.gmra.mxu0 %v132
    %v244 = vpop.f32.mrf.mxu0
    %v245 = vadd.f32 %v65, %v244
    %246 = vmatmul.f32.gmra.mxu0 %v135
    %v247 = vpop.f32.mrf.mxu0
    %v248 = vadd.f32 %v65, %v247
    %249 = vmatmul.f32.gmra.mxu0 %v138
    %v250 = vpop.f32.mrf.mxu0
    %v251 = vadd.f32 %v65, %v250
    %252 = vmatmul.f32.gmra.mxu0 %v141
    %v253 = vpop.f32.mrf.mxu0
    %v254 = vadd.f32 %v65, %v253
    %255 = vmatmul.f32.gmra.mxu0 %v144
    %v256 = vpop.f32.mrf.mxu0
    %v257 = vadd.f32 %v65, %v256
    %258 = vmatmul.f32.gmra.mxu0 %v147
    %v259 = vpop.f32.mrf.mxu0
    %v260 = vadd.f32 %v65, %v259
    %261 = vmatmul.f32.gmra.mxu0 %v150
    %v262 = vpop.f32.mrf.mxu0
    %v263 = vadd.f32 %v65, %v262
    %264 = vmatmul.f32.gmra.mxu0 %v153
    %v265 = vpop.f32.mrf.mxu0
    %v266 = vadd.f32 %v65, %v265
    %267 = vmatmul.f32.gmra.mxu0 %v156
    %v268 = vpop.f32.mrf.mxu0
    %v269 = vadd.f32 %v65, %v268
    %270 = vmatmul.f32.gmra.mxu0 %v159
    %v271 = vpop.f32.mrf.mxu0
    %v272 = vadd.f32 %v65, %v271
    %273 = vmatmul.f32.gmra.mxu0 %v162
    %v274 = vpop.f32.mrf.mxu0
    %v275 = vadd.f32 %v65, %v274
    %276 = vdwg.mxu0
    %277 = vst [vmem:[#allocation2] sm:$0xff] %v182
    %278 = vst [vmem:[#allocation2 + $0x8] sm:$0xff] %v185
    %279 = vst [vmem:[#allocation2 + $0x10] sm:$0xff] %v188
    %280 = vst [vmem:[#allocation2 + $0x18] sm:$0xff] %v191
    %281 = vst [vmem:[#allocation2 + $0x20] sm:$0xff] %v194
    %282 = vst [vmem:[#allocation2 + $0x28] sm:$0xff] %v197
    %283 = vst [vmem:[#allocation2 + $0x30] sm:$0xff] %v200
    %284 = vst [vmem:[#allocation2 + $0x38] sm:$0xff] %v203
    %285 = vst [vmem:[#allocation2 + $0x40] sm:$0xff] %v206
    %286 = vst [vmem:[#allocation2 + $0x48] sm:$0xff] %v209
    %287 = vst [vmem:[#allocation2 + $0x50] sm:$0xff] %v212
    %288 = vst [vmem:[#allocation2 + $0x58] sm:$0xff] %v215
    %289 = vst [vmem:[#allocation2 + $0x60] sm:$0xff] %v218
    %290 = vst [vmem:[#allocation2 + $0x68] sm:$0xff] %v221
    %291 = vst [vmem:[#allocation2 + $0x70] sm:$0xff] %v224
    %292 = vst [vmem:[#allocation2 + $0x78] sm:$0xff] %v227
    %293 = vst [vmem:[#allocation2 + $0x80] sm:$0xff] %v230
    %294 = vst [vmem:[#allocation2 + $0x88] sm:$0xff] %v233
    %295 = vst [vmem:[#allocation2 + $0x90] sm:$0xff] %v236
    %296 = vst [vmem:[#allocation2 + $0x98] sm:$0xff] %v239
    %297 = vst [vmem:[#allocation2 + $0xa0] sm:$0xff] %v242
    %298 = vst [vmem:[#allocation2 + $0xa8] sm:$0xff] %v245
    %299 = vst [vmem:[#allocation2 + $0xb0] sm:$0xff] %v248
    %300 = vst [vmem:[#allocation2 + $0xb8] sm:$0xff] %v251
    %301 = vst [vmem:[#allocation2 + $0xc0] sm:$0xff] %v254
    %302 = vst [vmem:[#allocation2 + $0xc8] sm:$0xff] %v257
    %303 = vst [vmem:[#allocation2 + $0xd0] sm:$0xff] %v260
    %304 = vst [vmem:[#allocation2 + $0xd8] sm:$0xff] %v263
    %305 = vst [vmem:[#allocation2 + $0xe0] sm:$0xff] %v266
    %306 = vst [vmem:[#allocation2 + $0xe8] sm:$0xff] %v269
    %307 = vst [vmem:[#allocation2 + $0xf0] sm:$0xff] %v272
    %308 = vst [vmem:[#allocation2 + $0xf8] sm:$0xff] %v275
    %v309 = vld [vmem:[%s3] sm:$0xff]
    %v310 = vld [vmem:[%s3 + $0x8] sm:$0xff]
    %v311 = vld [vmem:[%s3 + $0x10] sm:$0xff]
    %v312 = vld [vmem:[%s3 + $0x18] sm:$0xff]
    %v313 = vld [vmem:[%s3 + $0x20] sm:$0xff]
    %v314 = vld [vmem:[%s3 + $0x28] sm:$0xff]
    %v315 = vld [vmem:[%s3 + $0x30] sm:$0xff]
    %v316 = vld [vmem:[%s3 + $0x38] sm:$0xff]
    %v317 = vld [vmem:[%s3 + $0x40] sm:$0xff]
    %v318 = vld [vmem:[%s3 + $0x48] sm:$0xff]
    %v319 = vld [vmem:[%s3 + $0x50] sm:$0xff]
    %v320 = vld [vmem:[%s3 + $0x58] sm:$0xff]
    %v321 = vld [vmem:[%s3 + $0x60] sm:$0xff]
    %v322 = vld [vmem:[%s3 + $0x68] sm:$0xff]
    %v323 = vld [vmem:[%s3 + $0x70] sm:$0xff]
    %v324 = vld [vmem:[%s3 + $0x78] sm:$0xff]
    %v325 = vld [vmem:[%s3 + $0x80] sm:$0xff]
    %v326 = vld [vmem:[%s3 + $0x88] sm:$0xff]
    %v327 = vld [vmem:[%s3 + $0x90] sm:$0xff]
    %v328 = vld [vmem:[%s3 + $0x98] sm:$0xff]
    %v329 = vld [vmem:[%s3 + $0xa0] sm:$0xff]
    %v330 = vld [vmem:[%s3 + $0xa8] sm:$0xff]
    %v331 = vld [vmem:[%s3 + $0xb0] sm:$0xff]
    %v332 = vld [vmem:[%s3 + $0xb8] sm:$0xff]
    %v333 = vld [vmem:[%s3 + $0xc0] sm:$0xff]
    %v334 = vld [vmem:[%s3 + $0xc8] sm:$0xff]
    %v335 = vld [vmem:[%s3 + $0xd0] sm:$0xff]
    %v336 = vld [vmem:[%s3 + $0xd8] sm:$0xff]
    %v337 = vld [vmem:[%s3 + $0xe0] sm:$0xff]
    %v338 = vld [vmem:[%s3 + $0xe8] sm:$0xff]
    %v339 = vld [vmem:[%s3 + $0xf0] sm:$0xff]
    %v340 = vld [vmem:[%s3 + $0xf8] sm:$0xff]
    %v341 = vmax.f32 %v309, 0.0
    %v342 = vmax.f32 %v310, 0.0
    %v343 = vmax.f32 %v311, 0.0
    %v344 = vmax.f32 %v312, 0.0
    %v345 = vmax.f32 %v313, 0.0
    %v346 = vmax.f32 %v314, 0.0
    %v347 = vmax.f32 %v315, 0.0
    %v348 = vmax.f32 %v316, 0.0
    %v349 = vmax.f32 %v317, 0.0
    %v350 = vmax.f32 %v318, 0.0
    %v351 = vmax.f32 %v319, 0.0
    %v352 = vmax.f32 %v320, 0.0
    %v353 = vmax.f32 %v321, 0.0
    %v354 = vmax.f32 %v322, 0.0
    %v355 = vmax.f32 %v323, 0.0
    %v356 = vmax.f32 %v324, 0.0
    %v357 = vmax.f32 %v325, 0.0
    %v358 = vmax.f32 %v326, 0.0
    %v359 = vmax.f32 %v327, 0.0
    %v360 = vmax.f32 %v328, 0.0
    %v361 = vmax.f32 %v329, 0.0
    %v362 = vmax.f32 %v330, 0.0
    %v363 = vmax.f32 %v331, 0.0
    %v364 = vmax.f32 %v332, 0.0
    %v365 = vmax.f32 %v333, 0.0
    %v366 = vmax.f32 %v334, 0.0
    %v367 = vmax.f32 %v335, 0.0
    %v368 = vmax.f32 %v336, 0.0
    %v369 = vmax.f32 %v337, 0.0
    %v370 = vmax.f32 %v338, 0.0
    %v371 = vmax.f32 %v339, 0.0
    %v372 = vmax.f32 %v340, 0.0
    %v373 = vmin.f32 %v341, 10.0
    %v374 = vmin.f32 %v342, 10.0
    %v375 = vmin.f32 %v343, 10.0
    %v376 = vmin.f32 %v344, 10.0
    %v377 = vmin.f32 %v345, 10.0
    %v378 = vmin.f32 %v346, 10.0
    %v379 = vmin.f32 %v347, 10.0
    %v380 = vmin.f32 %v348, 10.0
    %v381 = vmin.f32 %v349, 10.0
    %v382 = vmin.f32 %v350, 10.0
    %v383 = vmin.f32 %v351, 10.0
    %v384 = vmin.f32 %v352, 10.0
    %v385 = vmin.f32 %v353, 10.0
    %v386 = vmin.f32 %v354, 10.0
    %v387 = vmin.f32 %v355, 10.0
    %v388 = vmin.f32 %v356, 10.0
    %v389 = vmin.f32 %v357, 10.0
    %v390 = vmin.f32 %v358, 10.0
    %v391 = vmin.f32 %v359, 10.0
    %v392 = vmin.f32 %v360, 10.0
    %v393 = vmin.f32 %v361, 10.0
    %v394 = vmin.f32 %v362, 10.0
    %v395 = vmin.f32 %v363, 10.0
    %v396 = vmin.f32 %v364, 10.0
    %v397 = vmin.f32 %v365, 10.0
    %v398 = vmin.f32 %v366, 10.0
    %v399 = vmin.f32 %v367, 10.0
    %v400 = vmin.f32 %v368, 10.0
    %v401 = vmin.f32 %v369, 10.0
    %v402 = vmin.f32 %v370, 10.0
    %v403 = vmin.f32 %v371, 10.0
    %v404 = vmin.f32 %v372, 10.0
    %v405 = vmul.f32 %v373, 1.442695
    %v406 = vpow.pop %v405
    %v407 = vmul.f32 %v374, 1.442695
    %v408 = vpow.pop %v407
    %v409 = vmul.f32 %v375, 1.442695
    %v410 = vpow.pop %v409
    %v411 = vmul.f32 %v376, 1.442695
    %v412 = vpow.pop %v411
    %v413 = vmul.f32 %v377, 1.442695
    %v414 = vpow.pop %v413
    %v415 = vmul.f32 %v378, 1.442695
    %v416 = vpow.pop %v415
    %v417 = vmul.f32 %v379, 1.442695
    %v418 = vpow.pop %v417
    %v419 = vmul.f32 %v380, 1.442695
    %v420 = vpow.pop %v419
    %v421 = vmul.f32 %v381, 1.442695
    %v422 = vpow.pop %v421
    %v423 = vmul.f32 %v382, 1.442695
    %v424 = vpow.pop %v423
    %v425 = vmul.f32 %v383, 1.442695
    %v426 = vpow.pop %v425
    %v427 = vmul.f32 %v384, 1.442695
    %v428 = vpow.pop %v427
    %v429 = vmul.f32 %v385, 1.442695
    %v430 = vpow.pop %v429
    %v431 = vmul.f32 %v386, 1.442695
    %v432 = vpow.pop %v431
    %v433 = vmul.f32 %v387, 1.442695
    %v434 = vpow.pop %v433
    %v435 = vmul.f32 %v388, 1.442695
    %v436 = vpow.pop %v435
    %v437 = vmul.f32 %v389, 1.442695
    %v438 = vpow.pop %v437
    %v439 = vmul.f32 %v390, 1.442695
    %v440 = vpow.pop %v439
    %v441 = vmul.f32 %v391, 1.442695
    %v442 = vpow.pop %v441
    %v443 = vmul.f32 %v392, 1.442695
    %v444 = vpow.pop %v443
    %v445 = vmul.f32 %v393, 1.442695
    %v446 = vpow.pop %v445
    %v447 = vmul.f32 %v394, 1.442695
    %v448 = vpow.pop %v447
    %v449 = vmul.f32 %v395, 1.442695
    %v450 = vpow.pop %v449
    %v451 = vmul.f32 %v396, 1.442695
    %v452 = vpow.pop %v451
    %v453 = vmul.f32 %v397, 1.442695
    %v454 = vpow.pop %v453
    %v455 = vmul.f32 %v398, 1.442695
    %v456 = vpow.pop %v455
    %v457 = vmul.f32 %v399, 1.442695
    %v458 = vpow.pop %v457
    %v459 = vmul.f32 %v400, 1.442695
    %v460 = vpow.pop %v459
    %v461 = vmul.f32 %v401, 1.442695
    %v462 = vpow.pop %v461
    %v463 = vmul.f32 %v402, 1.442695
    %v464 = vpow.pop %v463
    %v465 = vmul.f32 %v403, 1.442695
    %v466 = vpow.pop %v465
    %v467 = vmul.f32 %v404, 1.442695
    %v468 = vpow.pop %v467
    %vm469 = vcmask 7168
    %470 = vst.msk [vmem:[%s6] sm:$0xff] %vm469, %v406
    %471 = vst.msk [vmem:[%s6 + $0x8] sm:$0xff] %vm469, %v408
    %472 = vst.msk [vmem:[%s6 + $0x10] sm:$0xff] %vm469, %v410
    %473 = vst.msk [vmem:[%s6 + $0x18] sm:$0xff] %vm469, %v412
    %474 = vst.msk [vmem:[%s6 + $0x20] sm:$0xff] %vm469, %v414
    %475 = vst.msk [vmem:[%s6 + $0x28] sm:$0xff] %vm469, %v416
    %476 = vst.msk [vmem:[%s6 + $0x30] sm:$0xff] %vm469, %v418
    %477 = vst.msk [vmem:[%s6 + $0x38] sm:$0xff] %vm469, %v420
    %478 = vst.msk [vmem:[%s6 + $0x40] sm:$0xff] %vm469, %v422
    %479 = vst.msk [vmem:[%s6 + $0x48] sm:$0xff] %vm469, %v424
    %480 = vst.msk [vmem:[%s6 + $0x50] sm:$0xff] %vm469, %v426
    %481 = vst.msk [vmem:[%s6 + $0x58] sm:$0xff] %vm469, %v428
    %482 = vst.msk [vmem:[%s6 + $0x60] sm:$0xff] %vm469, %v430
    %483 = vst.msk [vmem:[%s6 + $0x68] sm:$0xff] %vm469, %v432
    %484 = vst.msk [vmem:[%s6 + $0x70] sm:$0xff] %vm469, %v434
    %485 = vst.msk [vmem:[%s6 + $0x78] sm:$0xff] %vm469, %v436
    %486 = vst.msk [vmem:[%s6 + $0x80] sm:$0xff] %vm469, %v438
    %487 = vst.msk [vmem:[%s6 + $0x88] sm:$0xff] %vm469, %v440
    %488 = vst.msk [vmem:[%s6 + $0x90] sm:$0xff] %vm469, %v442
    %489 = vst.msk [vmem:[%s6 + $0x98] sm:$0xff] %vm469, %v444
    %490 = vst.msk [vmem:[%s6 + $0xa0] sm:$0xff] %vm469, %v446
    %491 = vst.msk [vmem:[%s6 + $0xa8] sm:$0xff] %vm469, %v448
    %492 = vst.msk [vmem:[%s6 + $0xb0] sm:$0xff] %vm469, %v450
    %493 = vst.msk [vmem:[%s6 + $0xb8] sm:$0xff] %vm469, %v452
    %494 = vst.msk [vmem:[%s6 + $0xc0] sm:$0xff] %vm469, %v454
    %495 = vst.msk [vmem:[%s6 + $0xc8] sm:$0xff] %vm469, %v456
    %496 = vst.msk [vmem:[%s6 + $0xd0] sm:$0xff] %vm469, %v458
    %497 = vst.msk [vmem:[%s6 + $0xd8] sm:$0xff] %vm469, %v460
    %498 = vst.msk [vmem:[%s6 + $0xe0] sm:$0xff] %vm469, %v462
    %499 = vst.msk [vmem:[%s6 + $0xe8] sm:$0xff] %vm469, %v464
    %500 = vst.msk [vmem:[%s6 + $0xf0] sm:$0xff] %vm469, %v466
    %501 = vst.msk [vmem:[%s6 + $0xf8] sm:$0xff] %vm469, %v468
    %v502 = vld [vmem:[%s4] sm:$0x3]
    %v503 = vmax.f32 %v502, 0.0
    %v504 = vmin.f32 %v503, 10.0
    %v505 = vmul.f32 %v504, 1.442695
    %v506 = vpow.pop %v505
    %v507 = vlaneseq
    %vm508 = vcmp.ge.s32.totalorder %v507, 0
    %vm509 = vcmp.lt.s32.totalorder %v507, 256
    %vm510 = vmand %vm508, %vm509
    %511 = vst.msk [vmem:[#allocation4] sm:$0x3] %vm510, %v506
    // Predicated region
    $region22: #{tpu_custom_call.1} parent=1 // pred_check
      _
    $region23: #{tpu_custom_call.1} parent=1 // pred_check_branch
      %513 = sbr.rel (0) target = $region25
    $region24: #{tpu_custom_call.1} parent=1 // pred_region
      %515 = vsyncadd [#allocation3], 0
      %s516 = sshll.u32 [#allocation2], 4
      %s517 = int_to_ptr.vmem [resolvable:$true] %s516
      %s518 = sshll.u32 %s5, 4
      %s519 = int_to_ptr.hbm [resolvable:$true] %s518
      %524 = dma.vmem_to_hbm [thread:$0]  %s517, 4096, %s519, [#allocation3], 128, 128, 8
    $region25: #{tpu_custom_call.1} parent=1 // pred_fallthru
      _
    // Predicated region
    $region26: #{tpu_custom_call.1} parent=1 // pred_check
      _
    $region27: #{tpu_custom_call.1} parent=1 // pred_check_branch
      %526 = sbr.rel (0) target = $region29
    $region28: #{tpu_custom_call.1} parent=1 // pred_region
      _
    $region29: #{tpu_custom_call.1} parent=1 // pred_fallthru
      _
    // Predicated region
    $region30: #{tpu_custom_call.1} parent=1 // pred_check
      _
    $region31: #{tpu_custom_call.1} parent=1 // pred_check_branch
      %528 = sbr.rel (0) target = $region33
    $region32: #{tpu_custom_call.1} parent=1 // pred_region
      %530 = vsyncadd [#allocation5], 0
      %s532 = sshll.u32 [#allocation4], 4
      %s533 = int_to_ptr.vmem [resolvable:$true] %s532
      %s534 = sshll.u32 %s7, 4
      %s535 = int_to_ptr.hbm [resolvable:$true] %s534
      %537 = dma.vmem_to_hbm [thread:$0]  %s533, 32, %s535, [#allocation5]
    $region33: #{tpu_custom_call.1} parent=1 // pred_fallthru
      _
    // Predicated region
    $region34: #{tpu_custom_call.1} parent=1 // pred_check
      _
    $region35: #{tpu_custom_call.1} parent=1 // pred_check_branch
      %539 = sbr.rel (0) target = $region37
    $region36: #{tpu_custom_call.1} parent=1 // pred_region
      %541 = dma.done [#allocation3], 4096
    $region37: #{tpu_custom_call.1} parent=1 // pred_fallthru
      _
    // Predicated region
    $region38: #{tpu_custom_call.1} parent=1 // pred_check
      _
    $region39: #{tpu_custom_call.1} parent=1 // pred_check_branch
      %543 = sbr.rel (0) target = $region41
    $region40: #{tpu_custom_call.1} parent=1 // pred_region
      _
    $region41: #{tpu_custom_call.1} parent=1 // pred_fallthru
      _
    // Predicated region
    $region42: #{tpu_custom_call.1} parent=1 // pred_check
      _
    $region43: #{tpu_custom_call.1} parent=1 // pred_check_branch
      %545 = sbr.rel (0) target = $region45
    $region44: #{tpu_custom_call.1} parent=1 // pred_region
      %547 = dma.done [#allocation5], 32
    $region45: #{tpu_custom_call.1} parent=1 // pred_fallthru
      _
    %548 = vsyncpa [#allocation3], 1
    %549 = vsyncpa [#allocation5], 1

</llo_original>
